<compile_context>
chip_gen: v5e
topology: v5e:2x2
jax: 0.10.0
libtpu: 0.0.40
codegen_flags: <defaults>
</compile_context>

<pallas_src>
import functools
import math

import numpy as np

import jax
import jax.numpy as jnp
from jax.experimental import pallas as pl
from jax.experimental.pallas import tpu as pltpu

LATENT = 32          # latent_size (d_model), divisible by nhead=2
KERNEL_SIZE = 16     # latent_proliferation kernel_num
SIX = 6              # one_to_six kernel_num
NHEAD = 2
DFF = 2048           # nn.Transformer default dim_feedforward
N_ENC, N_DEC = 4, 2
BATCH = 2

F32 = jnp.float32
BF16 = jnp.bfloat16


def _device_is_v7x():
    try:
        kind = jax.devices()[0].device_kind.lower()
        return "v7" in kind
    except Exception:  # pragma: no cover - conservative fallback
        return False


# dual-core v7x keeps batch as a "parallel" grid axis; single-core v5e/v6e fold
# the batch into the row dimension (one grid step, better MXU fill).
_V7X = _device_is_v7x()


# ---------------------------- in-kernel helpers ------------------------------

def _ln(x, g, b, eps=1e-5):
    mu = jnp.mean(x, axis=-1, keepdims=True)
    var = jnp.mean(jnp.square(x - mu), axis=-1, keepdims=True)
    return (x - mu) * jax.lax.rsqrt(var + eps) * g + b


def _bn_train(x, g, b, eps=1e-5):
    # training-mode BatchNorm1d over the batch axis (biased variance)
    mu = jnp.mean(x, axis=0, keepdims=True)
    var = jnp.mean(jnp.square(x - mu), axis=0, keepdims=True)
    return (x - mu) * jax.lax.rsqrt(var + eps) * g + b


def _leaky(x):
    return jnp.where(x >= 0.0, x, 0.01 * x)


def _softmax(x):
    m = jnp.max(x, axis=-1, keepdims=True)
    e = jnp.exp(x - m)
    # EUP reciprocal (approx) instead of a VALU divide.
    return e * pl.reciprocal(jnp.sum(e, axis=-1, keepdims=True), approx=True)


def _attend(q, k, v, wo, bo, nhead, key_bias=None):
    """Multi-head attention on already-projected 2-D q (Lq,E), k/v (Lk,E).
    Per-head outputs are accumulated through per-head slices of Wo (no lane
    concat).  All dots run bf16 x bf16 with f32 accumulation."""
    E = q.shape[-1]
    dh = E // nhead
    scale = 1.0 / math.sqrt(dh)
    out = jnp.zeros((q.shape[0], wo.shape[-1]), F32)
    for h in range(nhead):
        sl = slice(h * dh, (h + 1) * dh)
        sc = jax.lax.dot_general((q[:, sl] * scale).astype(BF16),
                                 k[:, sl].astype(BF16),
                                 (((1,), (1,)), ((), ())),
                                 preferred_element_type=F32)
        if key_bias is not None:
            sc = sc + key_bias
        p = _softmax(sc)
        ctx = jnp.dot(p.astype(BF16), v[:, sl].astype(BF16),
                      preferred_element_type=F32)
        out = out + jnp.dot(ctx.astype(BF16), wo[sl, :],
                            preferred_element_type=F32)
    return out + bo


def _batched_attend(q, k, v, wo, bo, nhead, nb, lq, lk, key_bias=None):
    """Attention over rows stacked as (nb*lq, E) / (nb*lk, E)."""
    if nb == 1:
        return _attend(q, k, v, wo, bo, nhead, key_bias)
    parts = [
        _attend(q[b * lq:(b + 1) * lq], k[b * lk:(b + 1) * lk],
                v[b * lk:(b + 1) * lk], wo, bo, nhead, key_bias)
        for b in range(nb)
    ]
    return jnp.concatenate(parts, axis=0)


def _ffn(x, w1, b1, w2, b2):
    """relu(x@w1+b1)@w2+b2; bf16 weights, f32 accumulation; the (rows,2048)
    intermediate never leaves VMEM."""
    h = jnp.dot(x.astype(BF16), w1, preferred_element_type=F32) + b1
    h = jnp.maximum(h, 0.0)
    return jnp.dot(h.astype(BF16), w2, preferred_element_type=F32) + b2


# ------------------------------ Pallas kernels -------------------------------

def _head_kernel(z_ref,
                 w1_ref, b1_ref, g1_ref, be1_ref,
                 w2_ref, b2_ref, g2_ref, be2_ref,
                 w3_ref, b3_ref,
                 wp_ref, bp_ref,
                 pw_ref, pb_ref,
                 num_ref, nmax_ref, zp_ref):
    z = z_ref[...]                                           # (B, E) f32
    h = jnp.dot(z.astype(BF16), w1_ref[...], preferred_element_type=F32) + b1_ref[...]
    h = _leaky(_bn_train(h, g1_ref[...], be1_ref[...]))
    h = jnp.dot(h.astype(BF16), w2_ref[...], preferred_element_type=F32) + b2_ref[...]
    h = _leaky(_bn_train(h, g2_ref[...], be2_ref[...]))
    h = jnp.dot(h.astype(BF16), w3_ref[...], preferred_element_type=F32) + b3_ref[...]
    z_to_num = h + z
    # pred_node_num (out_features=1) as a lane reduction instead of an N=1 matmul
    nn_val = _leaky(jnp.sum(z_to_num * wp_ref[...], axis=-1, keepdims=True)
                    + bp_ref[...])                           # (B, 1)
    num_ref[...] = nn_val
    nmax_ref[...] = jnp.max(nn_val, keepdims=True)           # (1, 1) host-readback scalar
    # latent_proliferation: single lane-dense matmul (B,E)@(E,Kn*E)
    zp_ref[...] = jnp.dot(z.astype(BF16), pw_ref[...],
                          preferred_element_type=F32) + pb_ref[...]


def _encoder_stack_kernel(x_ref,
                          wqkv_ref, bqkv_ref, wo_ref, bo_ref,
                          n1g_ref, n1b_ref, n2g_ref, n2b_ref,
                          w1_ref, b1_ref, w2_ref, b2_ref,
                          fng_ref, fnb_ref,
                          o_ref, *, nhead, n_layers):
    # One grid step handles `nb` batch items; projections/FFN run on the
    # (nb*S, E) stacked rows, attention per batch item.  Post-norm layers.
    # TODO(synk): dropout p=0.1 (training mode) not reproduced.
    nb, S, E = x_ref.shape
    x = x_ref[...].reshape(nb * S, E)
    for l in range(n_layers):
        qkv = jnp.dot(x.astype(BF16), wqkv_ref[l],
                      preferred_element_type=F32) + bqkv_ref[l]    # fused QKV
        sa = _batched_attend(qkv[:, :E], qkv[:, E:2 * E], qkv[:, 2 * E:],
                             wo_ref[l], bo_ref[l], nhead, nb, S, S)
        x = _ln(x + sa, n1g_ref[l], n1b_ref[l])
        ff = _ffn(x, w1_ref[l], b1_ref[l], w2_ref[l], b2_ref[l])
        x = _ln(x + ff, n2g_ref[l], n2b_ref[l])
    o_ref[...] = _ln(x, fng_ref[...], fnb_ref[...]).reshape(nb, S, E)


def _decoder_stack_kernel(x_ref, mem_ref, kb_ref,
                          s_wqkv_ref, s_bqkv_ref, s_wo_ref, s_bo_ref,
                          c_wq_ref, c_bq_ref, c_wkv_ref, c_bkv_ref,
                          c_wo_ref, c_bo_ref,
                          n1g_ref, n1b_ref, n2g_ref, n2b_ref,
                          n3g_ref, n3b_ref,
                          w1_ref, b1_ref, w2_ref, b2_ref,
                          fng_ref, fnb_ref,
                          o_ref, *, nhead, n_layers):
    # TODO(synk): dropout p=0.1 (training mode) not reproduced.
    nb, T, E = x_ref.shape
    S = mem_ref.shape[1]
    x = x_ref[...].reshape(nb * T, E)
    mem = mem_ref[...].reshape(nb * S, E)
    kb = kb_ref[...]                                         # (1, T) pad-key bias
    for l in range(n_layers):
        # self attention (pad keys masked so T-bucketing stays exact)
        qkv = jnp.dot(x.astype(BF16), s_wqkv_ref[l],
                      preferred_element_type=F32) + s_bqkv_ref[l]
        sa = _batched_attend(qkv[:, :E], qkv[:, E:2 * E], qkv[:, 2 * E:],
                             s_wo_ref[l], s_bo_ref[l], nhead, nb, T, T,
                             key_bias=kb)
        x = _ln(x + sa, n1g_ref[l], n1b_ref[l])
        # cross attention (memory length S is never padded)
        q = jnp.dot(x.astype(BF16), c_wq_ref[l],
                    preferred_element_type=F32) + c_bq_ref[l]
        kv = jnp.dot(mem.astype(BF16), c_wkv_ref[l],
                     preferred_element_type=F32) + c_bkv_ref[l]
        ca = _batched_attend(q, kv[:, :E], kv[:, E:],
                             c_wo_ref[l], c_bo_ref[l], nhead, nb, T, S)
        x = _ln(x + ca, n2g_ref[l], n2b_ref[l])
        # FFN
        ff = _ffn(x, w1_ref[l], b1_ref[l], w2_ref[l], b2_ref[l])
        x = _ln(x + ff, n3g_ref[l], n3b_ref[l])
    o_ref[...] = _ln(x, fng_ref[...], fnb_ref[...]).reshape(nb, T, E)


def _six_gram_kernel(x_ref,
                     w6_ref, b6_ref,
                     tw1_ref, tb1_ref, tg_ref, tbe_ref, tw2_ref, tb2_ref,
                     o_ref, *, six, inv_dim):
    # one_to_six KernelLinear + to_seq_vector MLP + residual + Gram matrices,
    # writing the (nb, 6, T, T) output directly (no lane concat, no transpose).
    nb, T, E = x_ref.shape
    x = x_ref[...].reshape(nb * T, E)
    y6 = jnp.dot(x.astype(BF16), w6_ref[...],
                 preferred_element_type=F32) + b6_ref[...]          # (nb*T, 6E)
    for k in range(six):
        blk = y6[:, k * E:(k + 1) * E]                       # one KernelLinear slot
        h = jnp.dot(blk.astype(BF16), tw1_ref[...],
                    preferred_element_type=F32) + tb1_ref[...]
        h = jnp.maximum(_ln(h, tg_ref[...], tbe_ref[...]), 0.0)
        h = jnp.dot(h.astype(BF16), tw2_ref[...],
                    preferred_element_type=F32) + tb2_ref[...]
        sv = h + blk                                         # to_seq MLP + residual
        for b in range(nb):
            svb = sv[b * T:(b + 1) * T]                      # (T, E)
            g = jax.lax.dot_general(svb, svb, (((1,), (1,)), ((), ())),
                                    preferred_element_type=F32)
            o_ref[b, k] = g * inv_dim


# -------------------------------- wrappers -----------------------------------

def _const_spec(shape):
    nd = len(shape)
    return pl.BlockSpec(tuple(shape), lambda *_: (0,) * nd)


def _sem(parallel):
    return pltpu.CompilerParams(
        dimension_semantics=(("parallel",) if parallel else ("arbitrary",)))


@jax.jit
def head_forward(z, p):
    B, _ = z.shape
    kn_e = p["pw"].shape[1]
    ops = (p["w1"], p["b1"], p["g1"], p["be1"],
           p["w2"], p["b2"], p["g2"], p["be2"],
           p["w3"], p["b3"], p["wp"], p["bp"], p["pw"], p["pb"])
    return pl.pallas_call(
        _head_kernel,
        grid=(1,),
        in_specs=[_const_spec(z.shape)] + [_const_spec(o.shape) for o in ops],
        out_specs=(_const_spec((B, 1)), _const_spec((1, 1)), _const_spec((B, kn_e))),
        out_shape=(jax.ShapeDtypeStruct((B, 1), F32),
                   jax.ShapeDtypeStruct((1, 1), F32),
                   jax.ShapeDtypeStruct((B, kn_e), F32)),
    )(z, *ops)


@jax.jit
def encoder_forward(src, p):
    B, S, E = src.shape
    L = p["wqkv"].shape[0]
    nb = 1 if _V7X else B                                    # fold batch on 1-core chips
    weights = (p["wqkv"], p["bqkv"], p["wo"], p["bo"],
               p["n1g"], p["n1b"], p["n2g"], p["n2b"],
               p["w1"], p["b1"], p["w2"], p["b2"],
               p["fng"], p["fnb"])
    in_specs = [pl.BlockSpec((nb, S, E), lambda n: (n, 0, 0))]
    in_specs += [_const_spec(w.shape) for w in weights]
    return pl.pallas_call(
        functools.partial(_encoder_stack_kernel, nhead=NHEAD, n_layers=L),
        grid=(B // nb,),
        in_specs=in_specs,
        out_specs=pl.BlockSpec((nb, S, E), lambda n: (n, 0, 0)),
        out_shape=jax.ShapeDtypeStruct((B, S, E), F32),
        compiler_params=_sem(_V7X),
    )(src, *weights)


@jax.jit
def decoder_forward(tgt, mem, key_bias, p):
    B, T, E = tgt.shape
    S = mem.shape[1]
    L = p["s_wqkv"].shape[0]
    nb = 1 if _V7X else B
    weights = (p["s_wqkv"], p["s_bqkv"], p["s_wo"], p["s_bo"],
               p["c_wq"], p["c_bq"], p["c_wkv"], p["c_bkv"],
               p["c_wo"], p["c_bo"],
               p["n1g"], p["n1b"], p["n2g"], p["n2b"], p["n3g"], p["n3b"],
               p["w1"], p["b1"], p["w2"], p["b2"],
               p["fng"], p["fnb"])
    in_specs = [pl.BlockSpec((nb, T, E), lambda n: (n, 0, 0)),
                pl.BlockSpec((nb, S, E), lambda n: (n, 0, 0)),
                _const_spec(key_bias.shape)]
    in_specs += [_const_spec(w.shape) for w in weights]
    return pl.pallas_call(
        functools.partial(_decoder_stack_kernel, nhead=NHEAD, n_layers=L),
        grid=(B // nb,),
        in_specs=in_specs,
        out_specs=pl.BlockSpec((nb, T, E), lambda n: (n, 0, 0)),
        out_shape=jax.ShapeDtypeStruct((B, T, E), F32),
        compiler_params=_sem(_V7X),
    )(tgt, mem, key_bias, *weights)


@jax.jit
def six_gram_forward(out3d, p):
    B, T, E = out3d.shape
    n_k = p["w6"].shape[1] // E
    nb = 1 if _V7X else B
    ops = (p["w6"], p["b6"], p["tw1"], p["tb1"], p["tg"], p["tbe"],
           p["tw2"], p["tb2"])
    in_specs = [pl.BlockSpec((nb, T, E), lambda n: (n, 0, 0))]
    in_specs += [_const_spec(o.shape) for o in ops]
    return pl.pallas_call(
        functools.partial(_six_gram_kernel, six=n_k, inv_dim=1.0 / E),
        grid=(B // nb,),
        in_specs=in_specs,
        out_specs=pl.BlockSpec((nb, n_k, T, T), lambda n: (n, 0, 0, 0)),
        out_shape=jax.ShapeDtypeStruct((B, n_k, T, T), F32),
        compiler_params=_sem(_V7X),
    )(out3d, *ops)


# ------------------------------- host-side glue -------------------------------

def get_positional_encoding(seq_len, d_model, batch_size):
    # TODO(synk): source of get_positional_encoding not provided; standard
    # sinusoidal PE of shape (batch, seq, d_model) assumed (built on host in
    # numpy so no extra device launches sit between the kernels).
    pos = np.arange(seq_len, dtype=np.float32)[:, None]
    i = np.arange(0, d_model, 2, dtype=np.float32)
    div = np.exp(-math.log(10000.0) * i / d_model)
    pe = np.zeros((seq_len, d_model), dtype=np.float32)
    pe[:, 0::2] = np.sin(pos * div)
    pe[:, 1::2] = np.cos(pos * div)
    return np.ascontiguousarray(
        np.broadcast_to(pe[None], (batch_size, seq_len, d_model)))


def batch_spectrum(matrix, node_num):
    # TODO(synk): batch_spectrum source not provided; returning the eigenvalue
    # spectrum of each symmetric (T,T) matrix; node_num-based masking is not
    # reproduced.
    del node_num
    return jnp.linalg.eigvalsh(matrix)


# ------------------------------ forward pass ---------------------------------

def graph_decoder_forward(z, p):
    B, E = z.shape
    # Kernel 1: node_num (+ its max) and latent proliferation.
    node_num, node_max, zp_flat = head_forward(z, p["head"])
    src = zp_flat.reshape(B, KERNEL_SIZE, E)                 # (B, S, E)

    # Kernel 2 dispatched BEFORE the host readback so the D2H round trip of
    # node_max overlaps the encoder execution (node_max was produced by the
    # head kernel; device_get only waits on that buffer).
    mem = encoder_forward(src, p["enc"])                     # (B, S, E)

    max_node_num = int(jax.device_get(node_max)[0, 0])       # host sync (data-dependent shape)
    T = max(max_node_num - 1, 1)                             # torch: transpose(0,1)[1:]
    T_pad = max(8, ((T + 7) // 8) * 8)                       # bucket -> fewer recompiles,
                                                             # sublane-aligned tiles

    query = get_positional_encoding(T_pad + 1, E, B)         # rows 1..T match torch exactly
    tgt = query[:, 1:, :]                                    # (B, T_pad, E)
    key_bias = np.where(np.arange(T_pad) < T, 0.0, -1e9).astype(np.float32)[None, :]

    out = decoder_forward(tgt, mem, key_bias, p["dec"])      # (B, T_pad, E)
    gram = six_gram_forward(out, p["six"])                   # (B, 6, T_pad, T_pad)
    gram = gram[:, :, :T, :T]                                # drop padded rows/cols
    return node_num, batch_spectrum(gram, node_num)


# ------------------------------- parameters ----------------------------------

def init_params(key, E=LATENT):
    keys = iter(jax.random.split(key, 128))

    def wf(shape, fan_in):                                   # f32 base weight
        return jax.random.normal(next(keys), shape, dtype=F32) / math.sqrt(fan_in)

    def w(shape, fan_in):                                    # bf16 MXU weight
        return wf(shape, fan_in).astype(BF16)

    def b(shape, scale=0.05):
        return scale * jax.random.normal(next(keys), shape, dtype=F32)

    def ones(shape):
        return jnp.ones(shape, F32)

    def zeros(shape):
        return jnp.zeros(shape, F32)

    # head: pyg MLP([E,E,E,E], LeakyReLU) + pred_node_num + latent proliferation
    prol_w = wf((KERNEL_SIZE, E, E), E)        # torch KernelLinear layout (Kn,out,in)
    prol_b = b((KERNEL_SIZE, 1, E))
    head = {
        "w1": w((E, E), E), "b1": b((1, E)), "g1": ones((1, E)), "be1": zeros((1, E)),
        "w2": w((E, E), E), "b2": b((1, E)), "g2": ones((1, E)), "be2": zeros((1, E)),
        "w3": w((E, E), E), "b3": b((1, E)),
        # pred_node_num: tiny weight + positive bias so int(node_num.max()) is a
        # usable sequence length for the synthetic run.
        "wp": 0.02 * jax.random.normal(next(keys), (1, E), F32),
        "bp": jnp.full((1, 1), 9.0, F32),
        # (Kn,out,in) -> (in, Kn*out) single lane-dense matmul; bias -> (1, Kn*out)
        "pw": jnp.transpose(prol_w, (2, 0, 1)).reshape(E, KERNEL_SIZE * E).astype(BF16),
        "pb": prol_b.reshape(1, KERNEL_SIZE * E),
    }

    # encoder stack (4 post-norm layers) + final encoder LayerNorm
    L = N_ENC
    enc = {
        "wqkv": w((L, E, 3 * E), E), "bqkv": b((L, 1, 3 * E)),
        "wo": w((L, E, E), E), "bo": b((L, 1, E)),
        "n1g": ones((L, 1, E)), "n1b": zeros((L, 1, E)),
        "n2g": ones((L, 1, E)), "n2b": zeros((L, 1, E)),
        "w1": w((L, E, DFF), E), "b1": b((L, 1, DFF)),
        "w2": w((L, DFF, E), DFF), "b2": b((L, 1, E)),
        "fng": ones((1, E)), "fnb": zeros((1, E)),
    }

    # decoder stack (2 layers) + final decoder LayerNorm
    L = N_DEC
    dec = {
        "s_wqkv": w((L, E, 3 * E), E), "s_bqkv": b((L, 1, 3 * E)),
        "s_wo": w((L, E, E), E), "s_bo": b((L, 1, E)),
        "c_wq": w((L, E, E), E), "c_bq": b((L, 1, E)),
        "c_wkv": w((L, E, 2 * E), E), "c_bkv": b((L, 1, 2 * E)),
        "c_wo": w((L, E, E), E), "c_bo": b((L, 1, E)),
        "n1g": ones((L, 1, E)), "n1b": zeros((L, 1, E)),
        "n2g": ones((L, 1, E)), "n2b": zeros((L, 1, E)),
        "n3g": ones((L, 1, E)), "n3b": zeros((L, 1, E)),
        "w1": w((L, E, DFF), E), "b1": b((L, 1, DFF)),
        "w2": w((L, DFF, E), DFF), "b2": b((L, 1, E)),
        "fng": ones((1, E)), "fnb": zeros((1, E)),
    }

    # one_to_six KernelLinear + to_seq_vector MLP([E,E,E], layer_norm)
    six_w = wf((SIX, E, E), E)
    six_b = b((SIX, 1, E))
    six = {
        "w6": jnp.transpose(six_w, (2, 0, 1)).reshape(E, SIX * E).astype(BF16),
        "b6": six_b.reshape(1, SIX * E),
        "tw1": w((E, E), E), "tb1": b((1, E)),
        "tg": ones((1, E)), "tbe": zeros((1, E)),
        "tw2": w((E, E), E), "tb2": b((1, E)),
    }
    return {"head": head, "enc": enc, "dec": dec, "six": six}


if __name__ == "__main__":
    root = jax.random.PRNGKey(0)
    k_param, k_z = jax.random.split(root)
    params = init_params(k_param)
    z = jax.random.normal(k_z, (BATCH, LATENT), dtype=jnp.float32)

    node_num, spectrum = graph_decoder_forward(z, params)
    jax.block_until_ready((node_num, spectrum))

    assert node_num.shape == (BATCH, 1)
    assert spectrum.ndim == 3 and spectrum.shape[:2] == (BATCH, SIX)
    print("KERNEL_OK")
</pallas_src>

<mosaic_0001>
module attributes {stable_mosaic.version = 11 : i64} {
  func.func @_head_kernel(%arg0: i32, %arg1: memref<2x32xf32, #tpu.memory_space<vmem>>, %arg2: memref<32x32xbf16, #tpu.memory_space<vmem>>, %arg3: memref<1x32xf32, #tpu.memory_space<vmem>>, %arg4: memref<1x32xf32, #tpu.memory_space<vmem>>, %arg5: memref<1x32xf32, #tpu.memory_space<vmem>>, %arg6: memref<32x32xbf16, #tpu.memory_space<vmem>>, %arg7: memref<1x32xf32, #tpu.memory_space<vmem>>, %arg8: memref<1x32xf32, #tpu.memory_space<vmem>>, %arg9: memref<1x32xf32, #tpu.memory_space<vmem>>, %arg10: memref<32x32xbf16, #tpu.memory_space<vmem>>, %arg11: memref<1x32xf32, #tpu.memory_space<vmem>>, %arg12: memref<1x32xf32, #tpu.memory_space<vmem>>, %arg13: memref<1x1xf32, #tpu.memory_space<vmem>>, %arg14: memref<32x512xbf16, #tpu.memory_space<vmem>>, %arg15: memref<1x512xf32, #tpu.memory_space<vmem>>, %arg16: memref<2x1xf32, #tpu.memory_space<vmem>>, %arg17: memref<1x1xf32, #tpu.memory_space<vmem>>, %arg18: memref<2x512xf32, #tpu.memory_space<vmem>>) attributes {dimension_semantics = [#tpu.dimension_semantics<arbitrary>], iteration_bounds = array<i64: 1>, scalar_prefetch = 0 : i64, scratch_operands = 0 : i64, tpu.core_type = #tpu.core_type<tc>, window_params = [{pipeline_mode = #tpu.pipeline_mode<synchronous>, transform_indices = @transform_0, window_bounds = array<i64: 2, 32>}, {pipeline_mode = #tpu.pipeline_mode<synchronous>, transform_indices = @transform_1, window_bounds = array<i64: 32, 32>}, {pipeline_mode = #tpu.pipeline_mode<synchronous>, transform_indices = @transform_2, window_bounds = array<i64: 1, 32>}, {pipeline_mode = #tpu.pipeline_mode<synchronous>, transform_indices = @transform_3, window_bounds = array<i64: 1, 32>}, {pipeline_mode = #tpu.pipeline_mode<synchronous>, transform_indices = @transform_4, window_bounds = array<i64: 1, 32>}, {pipeline_mode = #tpu.pipeline_mode<synchronous>, transform_indices = @transform_5, window_bounds = array<i64: 32, 32>}, {pipeline_mode = #tpu.pipeline_mode<synchronous>, transform_indices = @transform_6, window_bounds = array<i64: 1, 32>}, {pipeline_mode = #tpu.pipeline_mode<synchronous>, transform_indices = @transform_7, window_bounds = array<i64: 1, 32>}, {pipeline_mode = #tpu.pipeline_mode<synchronous>, transform_indices = @transform_8, window_bounds = array<i64: 1, 32>}, {pipeline_mode = #tpu.pipeline_mode<synchronous>, transform_indices = @transform_9, window_bounds = array<i64: 32, 32>}, {pipeline_mode = #tpu.pipeline_mode<synchronous>, transform_indices = @transform_10, window_bounds = array<i64: 1, 32>}, {pipeline_mode = #tpu.pipeline_mode<synchronous>, transform_indices = @transform_11, window_bounds = array<i64: 1, 32>}, {pipeline_mode = #tpu.pipeline_mode<synchronous>, transform_indices = @transform_12, window_bounds = array<i64: 1, 1>}, {pipeline_mode = #tpu.pipeline_mode<synchronous>, transform_indices = @transform_13, window_bounds = array<i64: 32, 512>}, {pipeline_mode = #tpu.pipeline_mode<synchronous>, transform_indices = @transform_14, window_bounds = array<i64: 1, 512>}, {pipeline_mode = #tpu.pipeline_mode<synchronous>, transform_indices = @transform_15, window_bounds = array<i64: 2, 1>}, {pipeline_mode = #tpu.pipeline_mode<synchronous>, transform_indices = @transform_16, window_bounds = array<i64: 1, 1>}, {pipeline_mode = #tpu.pipeline_mode<synchronous>, transform_indices = @transform_17, window_bounds = array<i64: 2, 512>}]} {
    %c0 = arith.constant 0 : index
    %c0_0 = arith.constant 0 : index
    %0 = vector.load %arg1[%c0, %c0_0] : memref<2x32xf32, #tpu.memory_space<vmem>>, vector<2x32xf32>
    %1 = arith.truncf %0 : vector<2x32xf32> to vector<2x32xbf16>
    %c0_1 = arith.constant 0 : index
    %c0_2 = arith.constant 0 : index
    %2 = vector.load %arg2[%c0_1, %c0_2] : memref<32x32xbf16, #tpu.memory_space<vmem>>, vector<32x32xbf16>
    %cst = arith.constant dense<0.000000e+00> : vector<2x32xf32>
    %3 = tpu.matmul %1, %2, %cst {dimension_numbers = #tpu.dot_dimension_numbers<[1], [0], [0], [1], [0, 0, 1, 1], [], []>} : vector<2x32xbf16>, vector<32x32xbf16>, vector<2x32xf32> -> vector<2x32xf32>
    %c0_3 = arith.constant 0 : index
    %c0_4 = arith.constant 0 : index
    %4 = vector.load %arg3[%c0_3, %c0_4] : memref<1x32xf32, #tpu.memory_space<vmem>>, vector<1x32xf32>
    %5 = vector.broadcast %4 : vector<1x32xf32> to vector<2x32xf32>
    %6 = arith.addf %3, %5 : vector<2x32xf32>
    %c0_5 = arith.constant 0 : index
    %c0_6 = arith.constant 0 : index
    %7 = vector.load %arg4[%c0_5, %c0_6] : memref<1x32xf32, #tpu.memory_space<vmem>>, vector<1x32xf32>
    %c0_7 = arith.constant 0 : index
    %c0_8 = arith.constant 0 : index
    %8 = vector.load %arg5[%c0_7, %c0_8] : memref<1x32xf32, #tpu.memory_space<vmem>>, vector<1x32xf32>
    %cst_9 = arith.constant dense<0.000000e+00> : vector<32xf32>
    %9 = vector.multi_reduction <add>, %6, %cst_9 [0] : vector<2x32xf32> to vector<32xf32>
    %10 = vector.shape_cast %9 : vector<32xf32> to vector<1x32xf32>
    %cst_10 = arith.constant 2.000000e+00 : f32
    %11 = vector.broadcast %cst_10 : f32 to vector<1x32xf32>
    %12 = arith.divf %10, %11 : vector<1x32xf32>
    %13 = vector.broadcast %12 : vector<1x32xf32> to vector<2x32xf32>
    %14 = arith.subf %6, %13 : vector<2x32xf32>
    %15 = arith.mulf %14, %14 : vector<2x32xf32>
    %cst_11 = arith.constant dense<0.000000e+00> : vector<32xf32>
    %16 = vector.multi_reduction <add>, %15, %cst_11 [0] : vector<2x32xf32> to vector<32xf32>
    %17 = vector.shape_cast %16 : vector<32xf32> to vector<1x32xf32>
    %cst_12 = arith.constant 2.000000e+00 : f32
    %18 = vector.broadcast %cst_12 : f32 to vector<1x32xf32>
    %19 = arith.divf %17, %18 : vector<1x32xf32>
    %20 = vector.broadcast %12 : vector<1x32xf32> to vector<2x32xf32>
    %21 = arith.subf %6, %20 : vector<2x32xf32>
    %cst_13 = arith.constant 9.99999974E-6 : f32
    %22 = vector.broadcast %cst_13 : f32 to vector<1x32xf32>
    %23 = arith.addf %19, %22 : vector<1x32xf32>
    %24 = math.rsqrt %23 : vector<1x32xf32>
    %25 = vector.broadcast %24 : vector<1x32xf32> to vector<2x32xf32>
    %26 = arith.mulf %21, %25 : vector<2x32xf32>
    %27 = vector.broadcast %7 : vector<1x32xf32> to vector<2x32xf32>
    %28 = arith.mulf %26, %27 : vector<2x32xf32>
    %29 = vector.broadcast %8 : vector<1x32xf32> to vector<2x32xf32>
    %30 = arith.addf %28, %29 : vector<2x32xf32>
    %cst_14 = arith.constant 0.000000e+00 : f32
    %31 = vector.broadcast %cst_14 : f32 to vector<2x32xf32>
    %32 = arith.cmpf oge, %30, %31 : vector<2x32xf32>
    %cst_15 = arith.constant 0.00999999977 : f32
    %33 = vector.broadcast %cst_15 : f32 to vector<2x32xf32>
    %34 = arith.mulf %33, %30 : vector<2x32xf32>
    %35 = arith.select %32, %30, %34 : vector<2x32xi1>, vector<2x32xf32>
    %36 = arith.truncf %35 : vector<2x32xf32> to vector<2x32xbf16>
    %c0_16 = arith.constant 0 : index
    %c0_17 = arith.constant 0 : index
    %37 = vector.load %arg6[%c0_16, %c0_17] : memref<32x32xbf16, #tpu.memory_space<vmem>>, vector<32x32xbf16>
    %cst_18 = arith.constant dense<0.000000e+00> : vector<2x32xf32>
    %38 = tpu.matmul %36, %37, %cst_18 {dimension_numbers = #tpu.dot_dimension_numbers<[1], [0], [0], [1], [0, 0, 1, 1], [], []>} : vector<2x32xbf16>, vector<32x32xbf16>, vector<2x32xf32> -> vector<2x32xf32>
    %c0_19 = arith.constant 0 : index
    %c0_20 = arith.constant 0 : index
    %39 = vector.load %arg7[%c0_19, %c0_20] : memref<1x32xf32, #tpu.memory_space<vmem>>, vector<1x32xf32>
    %40 = vector.broadcast %39 : vector<1x32xf32> to vector<2x32xf32>
    %41 = arith.addf %38, %40 : vector<2x32xf32>
    %c0_21 = arith.constant 0 : index
    %c0_22 = arith.constant 0 : index
    %42 = vector.load %arg8[%c0_21, %c0_22] : memref<1x32xf32, #tpu.memory_space<vmem>>, vector<1x32xf32>
    %c0_23 = arith.constant 0 : index
    %c0_24 = arith.constant 0 : index
    %43 = vector.load %arg9[%c0_23, %c0_24] : memref<1x32xf32, #tpu.memory_space<vmem>>, vector<1x32xf32>
    %cst_25 = arith.constant dense<0.000000e+00> : vector<32xf32>
    %44 = vector.multi_reduction <add>, %41, %cst_25 [0] : vector<2x32xf32> to vector<32xf32>
    %45 = vector.shape_cast %44 : vector<32xf32> to vector<1x32xf32>
    %cst_26 = arith.constant 2.000000e+00 : f32
    %46 = vector.broadcast %cst_26 : f32 to vector<1x32xf32>
    %47 = arith.divf %45, %46 : vector<1x32xf32>
    %48 = vector.broadcast %47 : vector<1x32xf32> to vector<2x32xf32>
    %49 = arith.subf %41, %48 : vector<2x32xf32>
    %50 = arith.mulf %49, %49 : vector<2x32xf32>
    %cst_27 = arith.constant dense<0.000000e+00> : vector<32xf32>
    %51 = vector.multi_reduction <add>, %50, %cst_27 [0] : vector<2x32xf32> to vector<32xf32>
    %52 = vector.shape_cast %51 : vector<32xf32> to vector<1x32xf32>
    %cst_28 = arith.constant 2.000000e+00 : f32
    %53 = vector.broadcast %cst_28 : f32 to vector<1x32xf32>
    %54 = arith.divf %52, %53 : vector<1x32xf32>
    %55 = vector.broadcast %47 : vector<1x32xf32> to vector<2x32xf32>
    %56 = arith.subf %41, %55 : vector<2x32xf32>
    %cst_29 = arith.constant 9.99999974E-6 : f32
    %57 = vector.broadcast %cst_29 : f32 to vector<1x32xf32>
    %58 = arith.addf %54, %57 : vector<1x32xf32>
    %59 = math.rsqrt %58 : vector<1x32xf32>
    %60 = vector.broadcast %59 : vector<1x32xf32> to vector<2x32xf32>
    %61 = arith.mulf %56, %60 : vector<2x32xf32>
    %62 = vector.broadcast %42 : vector<1x32xf32> to vector<2x32xf32>
    %63 = arith.mulf %61, %62 : vector<2x32xf32>
    %64 = vector.broadcast %43 : vector<1x32xf32> to vector<2x32xf32>
    %65 = arith.addf %63, %64 : vector<2x32xf32>
    %cst_30 = arith.constant 0.000000e+00 : f32
    %66 = vector.broadcast %cst_30 : f32 to vector<2x32xf32>
    %67 = arith.cmpf oge, %65, %66 : vector<2x32xf32>
    %cst_31 = arith.constant 0.00999999977 : f32
    %68 = vector.broadcast %cst_31 : f32 to vector<2x32xf32>
    %69 = arith.mulf %68, %65 : vector<2x32xf32>
    %70 = arith.select %67, %65, %69 : vector<2x32xi1>, vector<2x32xf32>
    %71 = arith.truncf %70 : vector<2x32xf32> to vector<2x32xbf16>
    %c0_32 = arith.constant 0 : index
    %c0_33 = arith.constant 0 : index
    %72 = vector.load %arg10[%c0_32, %c0_33] : memref<32x32xbf16, #tpu.memory_space<vmem>>, vector<32x32xbf16>
    %cst_34 = arith.constant dense<0.000000e+00> : vector<2x32xf32>
    %73 = tpu.matmul %71, %72, %cst_34 {dimension_numbers = #tpu.dot_dimension_numbers<[1], [0], [0], [1], [0, 0, 1, 1], [], []>} : vector<2x32xbf16>, vector<32x32xbf16>, vector<2x32xf32> -> vector<2x32xf32>
    %c0_35 = arith.constant 0 : index
    %c0_36 = arith.constant 0 : index
    %74 = vector.load %arg11[%c0_35, %c0_36] : memref<1x32xf32, #tpu.memory_space<vmem>>, vector<1x32xf32>
    %75 = vector.broadcast %74 : vector<1x32xf32> to vector<2x32xf32>
    %76 = arith.addf %73, %75 : vector<2x32xf32>
    %77 = arith.addf %76, %0 : vector<2x32xf32>
    %c0_37 = arith.constant 0 : index
    %c0_38 = arith.constant 0 : index
    %78 = vector.load %arg12[%c0_37, %c0_38] : memref<1x32xf32, #tpu.memory_space<vmem>>, vector<1x32xf32>
    %79 = vector.broadcast %78 : vector<1x32xf32> to vector<2x32xf32>
    %80 = arith.mulf %77, %79 : vector<2x32xf32>
    %cst_39 = arith.constant dense<0.000000e+00> : vector<2xf32>
    %81 = vector.multi_reduction <add>, %80, %cst_39 [1] : vector<2x32xf32> to vector<2xf32>
    %82 = vector.shape_cast %81 : vector<2xf32> to vector<2x1xf32>
    %c0_40 = arith.constant 0 : index
    %c0_41 = arith.constant 0 : index
    %83 = vector.load %arg13[%c0_40, %c0_41] : memref<1x1xf32, #tpu.memory_space<vmem>>, vector<1x1xf32>
    %84 = vector.broadcast %83 : vector<1x1xf32> to vector<2x1xf32>
    %85 = arith.addf %82, %84 : vector<2x1xf32>
    %cst_42 = arith.constant 0.000000e+00 : f32
    %86 = vector.broadcast %cst_42 : f32 to vector<2x1xf32>
    %87 = arith.cmpf oge, %85, %86 : vector<2x1xf32>
    %cst_43 = arith.constant 0.00999999977 : f32
    %88 = vector.broadcast %cst_43 : f32 to vector<2x1xf32>
    %89 = arith.mulf %88, %85 : vector<2x1xf32>
    %90 = arith.select %87, %85, %89 : vector<2x1xi1>, vector<2x1xf32>
    %c0_44 = arith.constant 0 : index
    %c0_45 = arith.constant 0 : index
    %91 = vector.load %arg16[%c0_44, %c0_45] : memref<2x1xf32, #tpu.memory_space<vmem>>, vector<2x1xf32>
    tpu.vector_store %arg16[%c0_44, %c0_45], %90 {strides = array<i32>} : memref<2x1xf32, #tpu.memory_space<vmem>>, vector<2x1xf32>,
    %92 = vector.shape_cast %90 : vector<2x1xf32> to vector<1x2x1xf32>
    %cst_46 = arith.constant dense<0xFF800000> : vector<1xf32>
    %93 = vector.multi_reduction <maximumf>, %92, %cst_46 [1, 2] : vector<1x2x1xf32> to vector<1xf32>
    %94 = vector.shape_cast %93 : vector<1xf32> to vector<1x1x1xf32>
    %95 = vector.extract %94[0, 0, 0] : f32 from vector<1x1x1xf32>
    %96 = vector.broadcast %95 : f32 to vector<1x1xf32>
    %c0_47 = arith.constant 0 : index
    %c0_48 = arith.constant 0 : index
    %97 = vector.load %arg17[%c0_47, %c0_48] : memref<1x1xf32, #tpu.memory_space<vmem>>, vector<1x1xf32>
    tpu.vector_store %arg17[%c0_47, %c0_48], %96 {strides = array<i32>} : memref<1x1xf32, #tpu.memory_space<vmem>>, vector<1x1xf32>,
    %98 = arith.truncf %0 : vector<2x32xf32> to vector<2x32xbf16>
    %c0_49 = arith.constant 0 : index
    %c0_50 = arith.constant 0 : index
    %99 = vector.load %arg14[%c0_49, %c0_50] : memref<32x512xbf16, #tpu.memory_space<vmem>>, vector<32x512xbf16>
    %cst_51 = arith.constant dense<0.000000e+00> : vector<2x512xf32>
    %100 = tpu.matmul %98, %99, %cst_51 {dimension_numbers = #tpu.dot_dimension_numbers<[1], [0], [0], [1], [0, 0, 1, 1], [], []>} : vector<2x32xbf16>, vector<32x512xbf16>, vector<2x512xf32> -> vector<2x512xf32>
    %c0_52 = arith.constant 0 : index
    %c0_53 = arith.constant 0 : index
    %101 = vector.load %arg15[%c0_52, %c0_53] : memref<1x512xf32, #tpu.memory_space<vmem>>, vector<1x512xf32>
    %102 = vector.broadcast %101 : vector<1x512xf32> to vector<2x512xf32>
    %103 = arith.addf %100, %102 : vector<2x512xf32>
    %c0_54 = arith.constant 0 : index
    %c0_55 = arith.constant 0 : index
    %104 = vector.load %arg18[%c0_54, %c0_55] : memref<2x512xf32, #tpu.memory_space<vmem>>, vector<2x512xf32>
    tpu.vector_store %arg18[%c0_54, %c0_55], %103 {strides = array<i32>} : memref<2x512xf32, #tpu.memory_space<vmem>>, vector<2x512xf32>,
    return
  }
  func.func @transform_0(%arg0: i32) -> (i32, i32) {
    %c0_i32 = arith.constant 0 : i32
    %c0_i32_0 = arith.constant 0 : i32
    %c0_i32_1 = arith.constant 0 : i32
    return %c0_i32, %c0_i32_0 : i32, i32
  }
  func.func @transform_1(%arg0: i32) -> (i32, i32) {
    %c0_i32 = arith.constant 0 : i32
    %c0_i32_0 = arith.constant 0 : i32
    %c0_i32_1 = arith.constant 0 : i32
    return %c0_i32, %c0_i32_0 : i32, i32
  }
  func.func @transform_2(%arg0: i32) -> (i32, i32) {
    %c0_i32 = arith.constant 0 : i32
    %c0_i32_0 = arith.constant 0 : i32
    %c0_i32_1 = arith.constant 0 : i32
    return %c0_i32, %c0_i32_0 : i32, i32
  }
  func.func @transform_3(%arg0: i32) -> (i32, i32) {
    %c0_i32 = arith.constant 0 : i32
    %c0_i32_0 = arith.constant 0 : i32
    %c0_i32_1 = arith.constant 0 : i32
    return %c0_i32, %c0_i32_0 : i32, i32
  }
  func.func @transform_4(%arg0: i32) -> (i32, i32) {
    %c0_i32 = arith.constant 0 : i32
    %c0_i32_0 = arith.constant 0 : i32
    %c0_i32_1 = arith.constant 0 : i32
    return %c0_i32, %c0_i32_0 : i32, i32
  }
  func.func @transform_5(%arg0: i32) -> (i32, i32) {
    %c0_i32 = arith.constant 0 : i32
    %c0_i32_0 = arith.constant 0 : i32
    %c0_i32_1 = arith.constant 0 : i32
    return %c0_i32, %c0_i32_0 : i32, i32
  }
  func.func @transform_6(%arg0: i32) -> (i32, i32) {
    %c0_i32 = arith.constant 0 : i32
    %c0_i32_0 = arith.constant 0 : i32
    %c0_i32_1 = arith.constant 0 : i32
    return %c0_i32, %c0_i32_0 : i32, i32
  }
  func.func @transform_7(%arg0: i32) -> (i32, i32) {
    %c0_i32 = arith.constant 0 : i32
    %c0_i32_0 = arith.constant 0 : i32
    %c0_i32_1 = arith.constant 0 : i32
    return %c0_i32, %c0_i32_0 : i32, i32
  }
  func.func @transform_8(%arg0: i32) -> (i32, i32) {
    %c0_i32 = arith.constant 0 : i32
    %c0_i32_0 = arith.constant 0 : i32
    %c0_i32_1 = arith.constant 0 : i32
    return %c0_i32, %c0_i32_0 : i32, i32
  }
  func.func @transform_9(%arg0: i32) -> (i32, i32) {
    %c0_i32 = arith.constant 0 : i32
    %c0_i32_0 = arith.constant 0 : i32
    %c0_i32_1 = arith.constant 0 : i32
    return %c0_i32, %c0_i32_0 : i32, i32
  }
  func.func @transform_10(%arg0: i32) -> (i32, i32) {
    %c0_i32 = arith.constant 0 : i32
    %c0_i32_0 = arith.constant 0 : i32
    %c0_i32_1 = arith.constant 0 : i32
    return %c0_i32, %c0_i32_0 : i32, i32
  }
  func.func @transform_11(%arg0: i32) -> (i32, i32) {
    %c0_i32 = arith.constant 0 : i32
    %c0_i32_0 = arith.constant 0 : i32
    %c0_i32_1 = arith.constant 0 : i32
    return %c0_i32, %c0_i32_0 : i32, i32
  }
  func.func @transform_12(%arg0: i32) -> (i32, i32) {
    %c0_i32 = arith.constant 0 : i32
    %c0_i32_0 = arith.constant 0 : i32
    %c0_i32_1 = arith.constant 0 : i32
    return %c0_i32, %c0_i32_0 : i32, i32
  }
  func.func @transform_13(%arg0: i32) -> (i32, i32) {
    %c0_i32 = arith.constant 0 : i32
    %c0_i32_0 = arith.constant 0 : i32
    %c0_i32_1 = arith.constant 0 : i32
    return %c0_i32, %c0_i32_0 : i32, i32
  }
  func.func @transform_14(%arg0: i32) -> (i32, i32) {
    %c0_i32 = arith.constant 0 : i32
    %c0_i32_0 = arith.constant 0 : i32
    %c0_i32_1 = arith.constant 0 : i32
    return %c0_i32, %c0_i32_0 : i32, i32
  }
  func.func @transform_15(%arg0: i32) -> (i32, i32) {
    %c0_i32 = arith.constant 0 : i32
    %c0_i32_0 = arith.constant 0 : i32
    %c0_i32_1 = arith.constant 0 : i32
    return %c0_i32, %c0_i32_0 : i32, i32
  }
  func.func @transform_16(%arg0: i32) -> (i32, i32) {
    %c0_i32 = arith.constant 0 : i32
    %c0_i32_0 = arith.constant 0 : i32
    %c0_i32_1 = arith.constant 0 : i32
    return %c0_i32, %c0_i32_0 : i32, i32
  }
  func.func @transform_17(%arg0: i32) -> (i32, i32) {
    %c0_i32 = arith.constant 0 : i32
    %c0_i32_0 = arith.constant 0 : i32
    %c0_i32_1 = arith.constant 0 : i32
    return %c0_i32, %c0_i32_0 : i32, i32
  }
}

</mosaic_0001>

<llo_original>
// kernel: head_forward.1
$region0: #{head_forward.1}
  #allocation0 [shape = 'u32[]', space=smem, size = 0x4, offset = 0x4, fixed_abs, tag = 'smem constant byte address 0x4 - core index']
  #allocation1 [shape = 'u32[72,128]{1,0:T(1,128)}', space=vmem, size = 0x9000, scoped, tag = 'internal scratch']
  #allocation2 [shape = 'f32[1,1]{1,0:T(1,128)S(1)}', space=vmem, size = 0x200, scoped, tag = 'scoped memory for head_forward.1']
  %s0 = inlined_call_operand.vmem [shape: f32[2,32], index: 0, kind: input, shape index: {}]
  %s1 = inlined_call_operand.hbm [shape: bf16[32,32], index: 1, kind: input, shape index: {}]
  %s2 = inlined_call_operand.hbm [shape: f32[1,32], index: 2, kind: input, shape index: {}]
  %s3 = inlined_call_operand.vmem [shape: f32[1,32], index: 3, kind: input, shape index: {}]
  %s4 = inlined_call_operand.hbm [shape: f32[1,32], index: 4, kind: input, shape index: {}]
  %s5 = inlined_call_operand.hbm [shape: bf16[32,32], index: 5, kind: input, shape index: {}]
  %s6 = inlined_call_operand.hbm [shape: f32[1,32], index: 6, kind: input, shape index: {}]
  %s7 = inlined_call_operand.vmem [shape: f32[1,32], index: 7, kind: input, shape index: {}]
  %s8 = inlined_call_operand.hbm [shape: f32[1,32], index: 8, kind: input, shape index: {}]
  %s9 = inlined_call_operand.hbm [shape: bf16[32,32], index: 9, kind: input, shape index: {}]
  %s10 = inlined_call_operand.hbm [shape: f32[1,32], index: 10, kind: input, shape index: {}]
  %s11 = inlined_call_operand.vmem [shape: f32[1,32], index: 11, kind: input, shape index: {}]
  %s12 = inlined_call_operand.<no memory space> [shape: f32[1,1], index: 12, kind: input, shape index: {}]
  %s13 = inlined_call_operand.hbm [shape: bf16[32,512], index: 13, kind: input, shape index: {}]
  %s14 = inlined_call_operand.vmem [shape: f32[1,512], index: 14, kind: input, shape index: {}]
  %s15 = inlined_call_operand.vmem [shape: f32[2,1], index: 15, kind: output, shape index: {0}]
  %s16 = inlined_call_operand.hbm [shape: f32[1,1], index: 16, kind: output, shape index: {1}]
  %s17 = inlined_call_operand.hbm [shape: f32[2,512], index: 17, kind: output, shape index: {2}]
  %18 = xla_tuple %s15, %s16, %s17
  %s19 = sld [smem:[#allocation0]]
  $region122: #{head_forward.1} parent=0
    _
  %s21 = ssub.s32 1, %s19
  %s22 = scalar_select 0, %s21, %s19
  %v23 = vstv %s12
  %24 = vst [vmem:[#allocation2] sm:$0x1] %v23
  $region1: #{head_forward.1} parent=0
    #allocation3 [shape = 'u8[8192]{0}', space=vmem, size = 0x2000, scoped, tag = 'input window, operand 1, single buffered']
    #allocation4 [shape = 's32[1]{0}', space=sflag, size = 0x4, scoped, tag = 'scoped memory for head_forward.1']
    #allocation5 [shape = 's32[1]{0}', space=sflag, size = 0x4, scoped, tag = 'scoped memory for head_forward.1']
    #allocation6 [shape = 'u8[512]{0}', space=vmem, size = 0x400, scoped, tag = 'input window, operand 2, single buffered']
    #allocation7 [shape = 's32[1]{0}', space=sflag, size = 0x4, scoped, tag = 'scoped memory for head_forward.1']
    #allocation8 [shape = 'u8[512]{0}', space=vmem, size = 0x400, scoped, tag = 'input window, operand 4, single buffered']
    #allocation9 [shape = 'u8[8192]{0}', space=vmem, size = 0x2000, scoped, tag = 'input window, operand 5, single buffered']
    #allocation10 [shape = 's32[1]{0}', space=sflag, size = 0x4, scoped, tag = 'scoped memory for head_forward.1']
    #allocation11 [shape = 'u8[512]{0}', space=vmem, size = 0x400, scoped, tag = 'input window, operand 6, single buffered']
    #allocation12 [shape = 'u8[512]{0}', space=vmem, size = 0x400, scoped, tag = 'input window, operand 8, single buffered']
    #allocation13 [shape = 's32[1]{0}', space=sflag, size = 0x4, scoped, tag = 'scoped memory for head_forward.1']
    #allocation14 [shape = 'u8[8192]{0}', space=vmem, size = 0x2000, scoped, tag = 'input window, operand 9, single buffered']
    #allocation15 [shape = 'u8[512]{0}', space=vmem, size = 0x400, scoped, tag = 'input window, operand 10, single buffered']
    #allocation16 [shape = 's32[1]{0}', space=sflag, size = 0x4, scoped, tag = 'scoped memory for head_forward.1']
    #allocation17 [shape = 'u8[32768]{0}', space=vmem, size = 0x8000, scoped, tag = 'input window, operand 13, single buffered']
    #allocation18 [shape = 'u8[512]{0}', space=vmem, size = 0x400, scoped, tag = 'output window, operand 1, single buffered']
    #allocation19 [shape = 'u8[4096]{0}', space=vmem, size = 0x1000, scoped, tag = 'output window, operand 2, single buffered']
    #allocation20 [shape = 's32[1]{0}', space=sflag, size = 0x4, scoped, tag = 'scoped memory for head_forward.1']
    %25 = vsyncpa [#allocation4], 0
    %26 = vsyncpa [#allocation7], 0
    %27 = vsyncpa [#allocation10], 0
    %28 = vsyncpa [#allocation13], 0
    %29 = vsyncpa [#allocation16], 0
    %30 = vsyncpa [#allocation5], 0
    %31 = vsyncpa [#allocation20], 0
    // Predicated region
    $region2: #{head_forward.1} parent=1 // pred_check
      _
    $region3: #{head_forward.1} parent=1 // pred_check_branch
      %33 = sbr.rel (0) target = $region5
    $region4: #{head_forward.1} parent=1 // pred_region
      _
    $region5: #{head_forward.1} parent=1 // pred_fallthru
      _
    // Predicated region
    $region6: #{head_forward.1} parent=1 // pred_check
      _
    $region7: #{head_forward.1} parent=1 // pred_check_branch
      %35 = sbr.rel (0) target = $region9
    $region8: #{head_forward.1} parent=1 // pred_region
      %37 = vsyncadd [#allocation4], 0
      %s38 = sshll.u32 %s1, 4
      %s39 = int_to_ptr.hbm [resolvable:$true] %s38
      %s40 = sshll.u32 [#allocation3], 4
      %s41 = int_to_ptr.vmem [resolvable:$true] %s40
      %46 = dma.hbm_to_vmem [thread:$0]  %s39, 256, %s41, [#allocation4], 64, 64, 4
    $region9: #{head_forward.1} parent=1 // pred_fallthru
      _
    // Predicated region
    $region10: #{head_forward.1} parent=1 // pred_check
      _
    $region11: #{head_forward.1} parent=1 // pred_check_branch
      %48 = sbr.rel (0) target = $region13
    $region12: #{head_forward.1} parent=1 // pred_region
      %50 = vsyncadd [#allocation7], 0
      %s52 = sshll.u32 %s2, 4
      %s53 = int_to_ptr.hbm [resolvable:$true] %s52
      %s54 = sshll.u32 [#allocation6], 4
      %s55 = int_to_ptr.vmem [resolvable:$true] %s54
      %57 = dma.hbm_to_vmem [thread:$0]  %s53, 16, %s55, [#allocation7]
    $region13: #{head_forward.1} parent=1 // pred_fallthru
      _
    // Predicated region
    $region14: #{head_forward.1} parent=1 // pred_check
      _
    $region15: #{head_forward.1} parent=1 // pred_check_branch
      %59 = sbr.rel (0) target = $region17
    $region16: #{head_forward.1} parent=1 // pred_region
      _
    $region17: #{head_forward.1} parent=1 // pred_fallthru
      _
    // Predicated region
    $region18: #{head_forward.1} parent=1 // pred_check
      _
    $region19: #{head_forward.1} parent=1 // pred_check_branch
      %61 = sbr.rel (0) target = $region21
    $region20: #{head_forward.1} parent=1 // pred_region
      %63 = vsyncadd [#allocation7], 0
      %s65 = sshll.u32 %s4, 4
      %s66 = int_to_ptr.hbm [resolvable:$true] %s65
      %s67 = sshll.u32 [#allocation8], 4
      %s68 = int_to_ptr.vmem [resolvable:$true] %s67
      %70 = dma.hbm_to_vmem [thread:$0]  %s66, 16, %s68, [#allocation7]
    $region21: #{head_forward.1} parent=1 // pred_fallthru
      _
    // Predicated region
    $region22: #{head_forward.1} parent=1 // pred_check
      _
    $region23: #{head_forward.1} parent=1 // pred_check_branch
      %72 = sbr.rel (0) target = $region25
    $region24: #{head_forward.1} parent=1 // pred_region
      %74 = vsyncadd [#allocation10], 0
      %s75 = sshll.u32 %s5, 4
      %s76 = int_to_ptr.hbm [resolvable:$true] %s75
      %s77 = sshll.u32 [#allocation9], 4
      %s78 = int_to_ptr.vmem [resolvable:$true] %s77
      %83 = dma.hbm_to_vmem [thread:$0]  %s76, 256, %s78, [#allocation10], 64, 64, 4
    $region25: #{head_forward.1} parent=1 // pred_fallthru
      _
    // Predicated region
    $region26: #{head_forward.1} parent=1 // pred_check
      _
    $region27: #{head_forward.1} parent=1 // pred_check_branch
      %85 = sbr.rel (0) target = $region29
    $region28: #{head_forward.1} parent=1 // pred_region
      %87 = vsyncadd [#allocation10], 0
      %s89 = sshll.u32 %s6, 4
      %s90 = int_to_ptr.hbm [resolvable:$true] %s89
      %s91 = sshll.u32 [#allocation11], 4
      %s92 = int_to_ptr.vmem [resolvable:$true] %s91
      %94 = dma.hbm_to_vmem [thread:$0]  %s90, 16, %s92, [#allocation10]
    $region29: #{head_forward.1} parent=1 // pred_fallthru
      _
    // Predicated region
    $region30: #{head_forward.1} parent=1 // pred_check
      _
    $region31: #{head_forward.1} parent=1 // pred_check_branch
      %96 = sbr.rel (0) target = $region33
    $region32: #{head_forward.1} parent=1 // pred_region
      _
    $region33: #{head_forward.1} parent=1 // pred_fallthru
      _
    // Predicated region
    $region34: #{head_forward.1} parent=1 // pred_check
      _
    $region35: #{head_forward.1} parent=1 // pred_check_branch
      %98 = sbr.rel (0) target = $region37
    $region36: #{head_forward.1} parent=1 // pred_region
      %100 = vsyncadd [#allocation13], 0
      %s102 = sshll.u32 %s8, 4
      %s103 = int_to_ptr.hbm [resolvable:$true] %s102
      %s104 = sshll.u32 [#allocation12], 4
      %s105 = int_to_ptr.vmem [resolvable:$true] %s104
      %107 = dma.hbm_to_vmem [thread:$0]  %s103, 16, %s105, [#allocation13]
    $region37: #{head_forward.1} parent=1 // pred_fallthru
      _
    // Predicated region
    $region38: #{head_forward.1} parent=1 // pred_check
      _
    $region39: #{head_forward.1} parent=1 // pred_check_branch
      %109 = sbr.rel (0) target = $region41
    $region40: #{head_forward.1} parent=1 // pred_region
      %111 = vsyncadd [#allocation13], 0
      %s112 = sshll.u32 %s9, 4
      %s113 = int_to_ptr.hbm [resolvable:$true] %s112
      %s114 = sshll.u32 [#allocation14], 4
      %s115 = int_to_ptr.vmem [resolvable:$true] %s114
      %120 = dma.hbm_to_vmem [thread:$0]  %s113, 256, %s115, [#allocation13], 64, 64, 4
    $region41: #{head_forward.1} parent=1 // pred_fallthru
      _
    // Predicated region
    $region42: #{head_forward.1} parent=1 // pred_check
      _
    $region43: #{head_forward.1} parent=1 // pred_check_branch
      %122 = sbr.rel (0) target = $region45
    $region44: #{head_forward.1} parent=1 // pred_region
      %124 = vsyncadd [#allocation16], 0
      %s126 = sshll.u32 %s10, 4
      %s127 = int_to_ptr.hbm [resolvable:$true] %s126
      %s128 = sshll.u32 [#allocation15], 4
      %s129 = int_to_ptr.vmem [resolvable:$true] %s128
      %131 = dma.hbm_to_vmem [thread:$0]  %s127, 16, %s129, [#allocation16]
    $region45: #{head_forward.1} parent=1 // pred_fallthru
      _
    // Predicated region
    $region46: #{head_forward.1} parent=1 // pred_check
      _
    $region47: #{head_forward.1} parent=1 // pred_check_branch
      %133 = sbr.rel (0) target = $region49
    $region48: #{head_forward.1} parent=1 // pred_region
      _
    $region49: #{head_forward.1} parent=1 // pred_fallthru
      _
    // Predicated region
    $region50: #{head_forward.1} parent=1 // pred_check
      _
    $region51: #{head_forward.1} parent=1 // pred_check_branch
      %135 = sbr.rel (0) target = $region53
    $region52: #{head_forward.1} parent=1 // pred_region
      _
    $region53: #{head_forward.1} parent=1 // pred_fallthru
      _
    // Predicated region
    $region54: #{head_forward.1} parent=1 // pred_check
      _
    $region55: #{head_forward.1} parent=1 // pred_check_branch
      %137 = sbr.rel (0) target = $region57
    $region56: #{head_forward.1} parent=1 // pred_region
      %139 = vsyncadd [#allocation16], 0
      %s140 = sshll.u32 %s13, 4
      %s141 = int_to_ptr.hbm [resolvable:$true] %s140
      %s142 = sshll.u32 [#allocation17], 4
      %s143 = int_to_ptr.vmem [resolvable:$true] %s142
      %148 = dma.hbm_to_vmem [thread:$0]  %s141, 1024, %s143, [#allocation16], 256, 256, 16
    $region57: #{head_forward.1} parent=1 // pred_fallthru
      _
    // Predicated region
    $region58: #{head_forward.1} parent=1 // pred_check
      _
    $region59: #{head_forward.1} parent=1 // pred_check_branch
      %150 = sbr.rel (0) target = $region61
    $region60: #{head_forward.1} parent=1 // pred_region
      _
    $region61: #{head_forward.1} parent=1 // pred_fallthru
      _
    // Predicated region
    $region62: #{head_forward.1} parent=1 // pred_check
      _
    $region63: #{head_forward.1} parent=1 // pred_check_branch
      %152 = sbr.rel (0) target = $region65
    $region64: #{head_forward.1} parent=1 // pred_region
      %154 = dma.done [#allocation4], 256
    $region65: #{head_forward.1} parent=1 // pred_fallthru
      _
    // Predicated region
    $region66: #{head_forward.1} parent=1 // pred_check
      _
    $region67: #{head_forward.1} parent=1 // pred_check_branch
      %156 = sbr.rel (0) target = $region69
    $region68: #{head_forward.1} parent=1 // pred_region
      %158 = dma.done [#allocation7], 16
    $region69: #{head_forward.1} parent=1 // pred_fallthru
      _
    // Predicated region
    $region70: #{head_forward.1} parent=1 // pred_check
      _
    $region71: #{head_forward.1} parent=1 // pred_check_branch
      %160 = sbr.rel (0) target = $region73
    $region72: #{head_forward.1} parent=1 // pred_region
      %162 = dma.done [#allocation7], 16
    $region73: #{head_forward.1} parent=1 // pred_fallthru
      _
    // Predicated region
    $region74: #{head_forward.1} parent=1 // pred_check
      _
    $region75: #{head_forward.1} parent=1 // pred_check_branch
      %164 = sbr.rel (0) target = $region77
    $region76: #{head_forward.1} parent=1 // pred_region
      %166 = dma.done [#allocation10], 256
    $region77: #{head_forward.1} parent=1 // pred_fallthru
      _
    // Predicated region
    $region78: #{head_forward.1} parent=1 // pred_check
      _
    $region79: #{head_forward.1} parent=1 // pred_check_branch
      %168 = sbr.rel (0) target = $region81
    $region80: #{head_forward.1} parent=1 // pred_region
      %170 = dma.done [#allocation10], 16
    $region81: #{head_forward.1} parent=1 // pred_fallthru
      _
    // Predicated region
    $region82: #{head_forward.1} parent=1 // pred_check
      _
    $region83: #{head_forward.1} parent=1 // pred_check_branch
      %172 = sbr.rel (0) target = $region85
    $region84: #{head_forward.1} parent=1 // pred_region
      %174 = dma.done [#allocation13], 16
    $region85: #{head_forward.1} parent=1 // pred_fallthru
      _
    // Predicated region
    $region86: #{head_forward.1} parent=1 // pred_check
      _
    $region87: #{head_forward.1} parent=1 // pred_check_branch
      %176 = sbr.rel (0) target = $region89
    $region88: #{head_forward.1} parent=1 // pred_region
      %178 = dma.done [#allocation13], 256
    $region89: #{head_forward.1} parent=1 // pred_fallthru
      _
    // Predicated region
    $region90: #{head_forward.1} parent=1 // pred_check
      _
    $region91: #{head_forward.1} parent=1 // pred_check_branch
      %180 = sbr.rel (0) target = $region93
    $region92: #{head_forward.1} parent=1 // pred_region
      %182 = dma.done [#allocation16], 16
    $region93: #{head_forward.1} parent=1 // pred_fallthru
      _
    // Predicated region
    $region94: #{head_forward.1} parent=1 // pred_check
      _
    $region95: #{head_forward.1} parent=1 // pred_check_branch
      %184 = sbr.rel (0) target = $region97
    $region96: #{head_forward.1} parent=1 // pred_region
      %186 = dma.done [#allocation16], 1024
    $region97: #{head_forward.1} parent=1 // pred_fallthru
      _
    %v188 = vld [vmem:[%s0] sm:$0x3]
    %v189 = vpack.c.bf16 %v188, %v188
    %v190 = vld [vmem:[#allocation3] sm:$0xf]
    %v191 = vld [vmem:[#allocation3 + $0x4] sm:$0xf]
    %v192 = vld [vmem:[#allocation3 + $0x8] sm:$0xf]
    %v193 = vld [vmem:[#allocation3 + $0xc] sm:$0xf]
    %v194 = vld [vmem:[#allocation6] sm:$0x1]
    %v196 = vperm.slane %v194, 0
    %v202 = vunpack.c.l.b16 %v190
    %v203 = vunpack.c.l.b16 %v191
    %v204 = vunpack.c.l.b16 %v192
    %v205 = vunpack.c.l.b16 %v193
    %v206 = vpack.c.b16 %v203, %v202
    %v207 = vpack.c.b16 %v205, %v204
    %vm210 = vcmask 261120
    %v212 = vsel %vm210, %v189, 0
    %214 = vmatpush.bf16.msra.mxu0 0
    %215 = vmatpush.bf16.msra.mxu0 0
    %216 = vmatpush.bf16.msra.mxu0 0
    %217 = vmatpush.bf16.msra.mxu0 0
    %218 = vmatpush.bf16.msra.mxu0 0
    %219 = vmatpush.bf16.msra.mxu0 0
    %220 = vmatpush.bf16.msra.mxu0 %v207
    %221 = vmatpush.bf16.msra.mxu0 %v206
    %222 = vmatmul.bf16.gmra.mxu0 %v212
    %v223 = vpop.f32.mrf.mxu0
    %v224 = vadd.f32 %v196, %v223
    %v225 = vpop.f32.mrf.mxu0
    %226 = vdwg.mxu0
    %v227 = vld [vmem:[%s3] sm:$0x1]
    %v228 = vld [vmem:[#allocation8] sm:$0x1]
    %vm229 = vcmask 254976
    %v230 = vsel %vm229, %v224, 0.0
    %v231 = vrot.slane %v230, 4
    %v232 = vadd.f32 %v230, %v231
    %v233 = vrot.slane %v232, 2
    %v234 = vadd.f32 %v232, %v233
    %v235 = vrot.slane %v234, 1
    %v236 = vadd.f32 %v234, %v235
    %v237 = vrcp.pop 2.0
    %v238 = vmul.f32 2.0, %v237
    %v239 = vsub.f32 1.0, %v238
    %v240 = vmul.f32 %v237, %v239
    %v241 = vadd.f32 %v237, %v240
    %vm242 = vweird.f32 %v237
    %v243 = vsel %vm242, %v237, %v241
    %v244 = vmul.f32 %v236, %v243
    %v245 = vsub.f32 %v224, %v244
    %v246 = vmul.f32 %v245, %v245
    %v247 = vsel %vm229, %v246, 0.0
    %v248 = vrot.slane %v247, 4
    %v249 = vadd.f32 %v247, %v248
    %v250 = vrot.slane %v249, 2
    %v251 = vadd.f32 %v249, %v250
    %v252 = vrot.slane %v251, 1
    %v253 = vadd.f32 %v251, %v252
    %v254 = vmul.f32 %v253, %v243
    %v255 = vadd.f32 %v254, 1e-05
    %v256 = vrsqrt.pop %v255
    %v257 = vmul.f32 %v256, %v255
    %v258 = vmul.f32 %v257, %v256
    %v259 = vmul.f32 0.5, %v258
    %v260 = vsub.f32 1.5, %v259
    %v261 = vmul.f32 %v256, %v260
    %vm262 = vweird.f32 %v255
    %vm263 = vweird.f32 %v256
    %vm264 = vmor %vm262, %vm263
    %v265 = vsel %vm264, %v256, %v261
    %v266 = vmul.f32 %v245, %v265
    %v268 = vperm.slane %v227, 0
    %v270 = vmul.f32 %v266, %v268
    %v272 = vperm.slane %v228, 0
    %v274 = vadd.f32 %v270, %v272
    %vm275 = vcmp.ge.f32.partialorder %v274, 0.0
    %v276 = vmul.f32 %v274, 0.01
    %v277 = vsel %vm275, %v274, %v276
    %v278 = vpack.c.bf16 %v277, %v277
    %v279 = vld [vmem:[#allocation9] sm:$0xf]
    %v280 = vld [vmem:[#allocation9 + $0x4] sm:$0xf]
    %v281 = vld [vmem:[#allocation9 + $0x8] sm:$0xf]
    %v282 = vld [vmem:[#allocation9 + $0xc] sm:$0xf]
    %v283 = vld [vmem:[#allocation11] sm:$0x1]
    %v285 = vperm.slane %v283, 0
    %v291 = vunpack.c.l.b16 %v279
    %v292 = vunpack.c.l.b16 %v280
    %v293 = vunpack.c.l.b16 %v281
    %v294 = vunpack.c.l.b16 %v282
    %v295 = vpack.c.b16 %v292, %v291
    %v296 = vpack.c.b16 %v294, %v293
    %v300 = vsel %vm210, %v278, 0
    %302 = vmatpush.bf16.msra.mxu0 0
    %303 = vmatpush.bf16.msra.mxu0 0
    %304 = vmatpush.bf16.msra.mxu0 0
    %305 = vmatpush.bf16.msra.mxu0 0
    %306 = vmatpush.bf16.msra.mxu0 0
    %307 = vmatpush.bf16.msra.mxu0 0
    %308 = vmatpush.bf16.msra.mxu0 %v296
    %309 = vmatpush.bf16.msra.mxu0 %v295
    %310 = vmatmul.bf16.gmra.mxu0 %v300
    %v311 = vpop.f32.mrf.mxu0
    %v312 = vadd.f32 %v285, %v311
    %v313 = vpop.f32.mrf.mxu0
    %314 = vdwg.mxu0
    %v315 = vld [vmem:[%s7] sm:$0x1]
    %v316 = vld [vmem:[#allocation12] sm:$0x1]
    %v317 = vsel %vm229, %v312, 0.0
    %v318 = vrot.slane %v317, 4
    %v319 = vadd.f32 %v317, %v318
    %v320 = vrot.slane %v319, 2
    %v321 = vadd.f32 %v319, %v320
    %v322 = vrot.slane %v321, 1
    %v323 = vadd.f32 %v321, %v322
    %v324 = vmul.f32 %v323, %v243
    %v325 = vsub.f32 %v312, %v324
    %v326 = vmul.f32 %v325, %v325
    %v327 = vsel %vm229, %v326, 0.0
    %v328 = vrot.slane %v327, 4
    %v329 = vadd.f32 %v327, %v328
    %v330 = vrot.slane %v329, 2
    %v331 = vadd.f32 %v329, %v330
    %v332 = vrot.slane %v331, 1
    %v333 = vadd.f32 %v331, %v332
    %v334 = vmul.f32 %v333, %v243
    %v335 = vadd.f32 %v334, 1e-05
    %v336 = vrsqrt.pop %v335
    %v337 = vmul.f32 %v336, %v335
    %v338 = vmul.f32 %v337, %v336
    %v339 = vmul.f32 0.5, %v338
    %v340 = vsub.f32 1.5, %v339
    %v341 = vmul.f32 %v336, %v340
    %vm342 = vweird.f32 %v335
    %vm343 = vweird.f32 %v336
    %vm344 = vmor %vm342, %vm343
    %v345 = vsel %vm344, %v336, %v341
    %v346 = vmul.f32 %v325, %v345
    %v348 = vperm.slane %v315, 0
    %v350 = vmul.f32 %v346, %v348
    %v352 = vperm.slane %v316, 0
    %v354 = vadd.f32 %v350, %v352
    %vm355 = vcmp.ge.f32.partialorder %v354, 0.0
    %v356 = vmul.f32 %v354, 0.01
    %v357 = vsel %vm355, %v354, %v356
    %v358 = vpack.c.bf16 %v357, %v357
    %v359 = vld [vmem:[#allocation14] sm:$0xf]
    %v360 = vld [vmem:[#allocation14 + $0x4] sm:$0xf]
    %v361 = vld [vmem:[#allocation14 + $0x8] sm:$0xf]
    %v362 = vld [vmem:[#allocation14 + $0xc] sm:$0xf]
    %v363 = vld [vmem:[#allocation15] sm:$0x1]
    %v365 = vperm.slane %v363, 0
    %v371 = vunpack.c.l.b16 %v359
    %v372 = vunpack.c.l.b16 %v360
    %v373 = vunpack.c.l.b16 %v361
    %v374 = vunpack.c.l.b16 %v362
    %v375 = vpack.c.b16 %v372, %v371
    %v376 = vpack.c.b16 %v374, %v373
    %v380 = vsel %vm210, %v358, 0
    %382 = vmatpush.bf16.msra.mxu0 0
    %383 = vmatpush.bf16.msra.mxu0 0
    %384 = vmatpush.bf16.msra.mxu0 0
    %385 = vmatpush.bf16.msra.mxu0 0
    %386 = vmatpush.bf16.msra.mxu0 0
    %387 = vmatpush.bf16.msra.mxu0 0
    %388 = vmatpush.bf16.msra.mxu0 %v376
    %389 = vmatpush.bf16.msra.mxu0 %v375
    %390 = vmatmul.bf16.gmra.mxu0 %v380
    %v391 = vpop.f32.mrf.mxu0
    %v392 = vadd.f32 %v365, %v391
    %v393 = vpop.f32.mrf.mxu0
    %394 = vdwg.mxu0
    %v395 = vadd.f32 %v392, %v188
    %v396 = vld [vmem:[%s11] sm:$0x1]
    %v398 = vperm.slane %v396, 0
    %v400 = vmul.f32 %v395, %v398
    %v401 = vsel %vm229, %v400, 0.0
    %402 = vadd.xlane.f32.xlu0 %v401
    %v403 = vpop.xlane.xlu0 %402
    %v404 = vld [vmem:[#allocation2] sm:$0x1]
    %v406 = vperm.slane %v404, 0
    %v408 = vadd.f32 %v403, %v406
    %vm409 = vcmp.ge.f32.partialorder %v408, 0.0
    %v410 = vmul.f32 %v408, 0.01
    %v411 = vsel %vm409, %v408, %v410
    %vm412 = vcmask 1024
    %413 = vst.msk [vmem:[%s15] sm:$0x3] %vm412, %v411
    %v414 = vsel %vm412, %v411, -inf
    %415 = vmax.xlane.f32.xlu0 %v414
    %v416 = vpop.xlane.xlu0 %415
    %v417 = vrot.slane %v416, 4
    %v418 = vmax.f32 %v416, %v417
    %v419 = vrot.slane %v418, 2
    %v420 = vmax.f32 %v418, %v419
    %v421 = vrot.slane %v420, 1
    %v422 = vmax.f32 %v420, %v421
    %s423 = vtos %v422
    %v424 = vstv %s423
    %vm425 = vcmask 0
    %426 = vst.msk [vmem:[#allocation18] sm:$0x1] %vm425, %v424
    %v427 = vld [vmem:[#allocation17] sm:$0xff]
    %v428 = vld [vmem:[#allocation17 + $0x8] sm:$0xff]
    %v429 = vld [vmem:[#allocation17 + $0x10] sm:$0xff]
    %v430 = vld [vmem:[#allocation17 + $0x18] sm:$0xff]
    %v431 = vld [vmem:[#allocation17 + $0x20] sm:$0xff]
    %v432 = vld [vmem:[#allocation17 + $0x28] sm:$0xff]
    %v433 = vld [vmem:[#allocation17 + $0x30] sm:$0xff]
    %v434 = vld [vmem:[#allocation17 + $0x38] sm:$0xff]
    %v435 = vld [vmem:[%s14] sm:$0xf]
    %v437 = vperm.slane %v435, 0
    %v438 = vperm.slane %v435, 1
    %v439 = vperm.slane %v435, 2
    %v440 = vperm.slane %v435, 3
    %v453 = vunpack.c.l.b16 %v427
    %v454 = vunpack.c.h.b16 %v427
    %v455 = vunpack.c.l.b16 %v428
    %v456 = vunpack.c.h.b16 %v428
    %v457 = vunpack.c.l.b16 %v429
    %v458 = vunpack.c.h.b16 %v429
    %v459 = vunpack.c.l.b16 %v430
    %v460 = vunpack.c.h.b16 %v430
    %v461 = vunpack.c.l.b16 %v431
    %v462 = vunpack.c.h.b16 %v431
    %v463 = vunpack.c.l.b16 %v432
    %v464 = vunpack.c.h.b16 %v432
    %v465 = vunpack.c.l.b16 %v433
    %v466 = vunpack.c.h.b16 %v433
    %v467 = vunpack.c.l.b16 %v434
    %v468 = vunpack.c.h.b16 %v434
    %v469 = vpack.c.b16 %v457, %v453
    %v470 = vpack.c.b16 %v458, %v454
    %v471 = vpack.c.b16 %v459, %v455
    %v472 = vpack.c.b16 %v460, %v456
    %v473 = vpack.c.b16 %v465, %v461
    %v474 = vpack.c.b16 %v466, %v462
    %v475 = vpack.c.b16 %v467, %v463
    %v476 = vpack.c.b16 %v468, %v464
    %485 = vmatpush.bf16.msra.mxu0 0
    %486 = vmatpush.bf16.msra.mxu0 0
    %487 = vmatpush.bf16.msra.mxu0 0
    %488 = vmatpush.bf16.msra.mxu0 0
    %489 = vmatpush.bf16.msra.mxu0 0
    %490 = vmatpush.bf16.msra.mxu0 0
    %491 = vmatpush.bf16.msra.mxu0 %v473
    %492 = vmatpush.bf16.msra.mxu0 %v469
    %493 = vmatmul.bf16.gmra.mxu0 %v212
    %v494 = vpop.f32.mrf.mxu0
    %v495 = vadd.f32 %v437, %v494
    %v496 = vpop.f32.mrf.mxu0
    %497 = vdwg.mxu0
    %498 = vmatpush.bf16.msra.mxu0 0
    %499 = vmatpush.bf16.msra.mxu0 0
    %500 = vmatpush.bf16.msra.mxu0 0
    %501 = vmatpush.bf16.msra.mxu0 0
    %502 = vmatpush.bf16.msra.mxu0 0
    %503 = vmatpush.bf16.msra.mxu0 0
    %504 = vmatpush.bf16.msra.mxu0 %v474
    %505 = vmatpush.bf16.msra.mxu0 %v470
    %506 = vmatmul.bf16.gmra.mxu0 %v212
    %v507 = vpop.f32.mrf.mxu0
    %v508 = vadd.f32 %v438, %v507
    %v509 = vpop.f32.mrf.mxu0
    %510 = vdwg.mxu0
    %511 = vmatpush.bf16.msra.mxu0 0
    %512 = vmatpush.bf16.msra.mxu0 0
    %513 = vmatpush.bf16.msra.mxu0 0
    %514 = vmatpush.bf16.msra.mxu0 0
    %515 = vmatpush.bf16.msra.mxu0 0
    %516 = vmatpush.bf16.msra.mxu0 0
    %517 = vmatpush.bf16.msra.mxu0 %v475
    %518 = vmatpush.bf16.msra.mxu0 %v471
    %519 = vmatmul.bf16.gmra.mxu0 %v212
    %v520 = vpop.f32.mrf.mxu0
    %v521 = vadd.f32 %v439, %v520
    %v522 = vpop.f32.mrf.mxu0
    %523 = vdwg.mxu0
    %524 = vmatpush.bf16.msra.mxu0 0
    %525 = vmatpush.bf16.msra.mxu0 0
    %526 = vmatpush.bf16.msra.mxu0 0
    %527 = vmatpush.bf16.msra.mxu0 0
    %528 = vmatpush.bf16.msra.mxu0 0
    %529 = vmatpush.bf16.msra.mxu0 0
    %530 = vmatpush.bf16.msra.mxu0 %v476
    %531 = vmatpush.bf16.msra.mxu0 %v472
    %532 = vmatmul.bf16.gmra.mxu0 %v212
    %v533 = vpop.f32.mrf.mxu0
    %v534 = vadd.f32 %v440, %v533
    %v535 = vpop.f32.mrf.mxu0
    %536 = vdwg.mxu0
    %v541 = vrot.slane %v508, 6
    %v542 = vrot.slane %v521, 4
    %v543 = vrot.slane %v534, 2
    %vm544 = vcmask 1041408
    %v545 = vsel %vm544, %v495, %v541
    %vm546 = vcmask 1045508
    %v547 = vsel %vm546, %v542, %v543
    %vm548 = vcmask 1043456
    %v549 = vsel %vm548, %v545, %v547
    %551 = vst [vmem:[#allocation19] sm:$0xff] %v549
    // Predicated region
    $region98: #{head_forward.1} parent=1 // pred_check
      _
    $region99: #{head_forward.1} parent=1 // pred_check_branch
      %553 = sbr.rel (0) target = $region101
    $region100: #{head_forward.1} parent=1 // pred_region
      _
    $region101: #{head_forward.1} parent=1 // pred_fallthru
      _
    // Predicated region
    $region102: #{head_forward.1} parent=1 // pred_check
      _
    $region103: #{head_forward.1} parent=1 // pred_check_branch
      %555 = sbr.rel (0) target = $region105
    $region104: #{head_forward.1} parent=1 // pred_region
      %557 = vsyncadd [#allocation5], 0
      %s559 = sshll.u32 [#allocation18], 4
      %s560 = int_to_ptr.vmem [resolvable:$true] %s559
      %s561 = sshll.u32 %s16, 4
      %s562 = int_to_ptr.hbm [resolvable:$true] %s561
      %564 = dma.vmem_to_hbm [thread:$0]  %s560, 16, %s562, [#allocation5]
    $region105: #{head_forward.1} parent=1 // pred_fallthru
      _
    // Predicated region
    $region106: #{head_forward.1} parent=1 // pred_check
      _
    $region107: #{head_forward.1} parent=1 // pred_check_branch
      %566 = sbr.rel (0) target = $region109
    $region108: #{head_forward.1} parent=1 // pred_region
      %568 = vsyncadd [#allocation20], 0
      %s570 = sshll.u32 [#allocation19], 4
      %s571 = int_to_ptr.vmem [resolvable:$true] %s570
      %s572 = sshll.u32 %s17, 4
      %s573 = int_to_ptr.hbm [resolvable:$true] %s572
      %575 = dma.vmem_to_hbm [thread:$0]  %s571, 128, %s573, [#allocation20]
    $region109: #{head_forward.1} parent=1 // pred_fallthru
      _
    // Predicated region
    $region110: #{head_forward.1} parent=1 // pred_check
      _
    $region111: #{head_forward.1} parent=1 // pred_check_branch
      %577 = sbr.rel (0) target = $region113
    $region112: #{head_forward.1} parent=1 // pred_region
      _
    $region113: #{head_forward.1} parent=1 // pred_fallthru
      _
    // Predicated region
    $region114: #{head_forward.1} parent=1 // pred_check
      _
    $region115: #{head_forward.1} parent=1 // pred_check_branch
      %579 = sbr.rel (0) target = $region117
    $region116: #{head_forward.1} parent=1 // pred_region
      %581 = dma.done [#allocation5], 16
    $region117: #{head_forward.1} parent=1 // pred_fallthru
      _
    // Predicated region
    $region118: #{head_forward.1} parent=1 // pred_check
      _
    $region119: #{head_forward.1} parent=1 // pred_check_branch
      %583 = sbr.rel (0) target = $region121
    $region120: #{head_forward.1} parent=1 // pred_region
      %585 = dma.done [#allocation20], 128
    $region121: #{head_forward.1} parent=1 // pred_fallthru
      _
    %586 = vsyncpa [#allocation4], 1
    %587 = vsyncpa [#allocation7], 1
    %588 = vsyncpa [#allocation10], 1
    %589 = vsyncpa [#allocation13], 1
    %590 = vsyncpa [#allocation16], 1
    %591 = vsyncpa [#allocation5], 1
    %592 = vsyncpa [#allocation20], 1

</llo_original>
